<compile_context>
chip_gen: v6e
topology: v6e:2x2x1
jax: 0.10.0
libtpu: 0.0.40
codegen_flags: <defaults>
</compile_context>

<pallas_src>
import functools

import jax
import jax.numpy as jnp
from jax.experimental import pallas as pl
from jax.experimental.pallas import tpu as pltpu

_LANES = 128
_SUBLANES = 32                     # multiple of 8/16/32 -> legal tile for f32/bf16/int8
_TWO_CORE_MIN_BYTES = 1 * 1024 * 1024   # above this, force >=2 grid steps (v7x megacore)
_VMEM_SLACK_BYTES = 4 * 1024 * 1024


def _round_up(v: int, m: int) -> int:
    return ((v + m - 1) // m) * m


@functools.lru_cache(maxsize=1)
def _default_block_bytes() -> int:
    """Per-generation default block size for this bandwidth-bound stream."""
    kind = ""
    try:
        kind = jax.devices()[0].device_kind.lower()
    except Exception:  # pragma: no cover - defensive; fall back to moderate default
        pass
    if "v7" in kind or "7x" in kind:
        # v7x HBM ~3.2 TB/s: 2 MiB blocks leave 15-25% on the table from the
        # fixed per-step overhead; 8 MiB blocks cut that to <10%.
        return 8 * 1024 * 1024
    if "v6" in kind:
        return 4 * 1024 * 1024
    if "v5" in kind:
        # v5e (~820 GB/s): 2 MiB already puts per-step overhead <8%; bigger
        # blocks buy nothing and burn scoped VMEM.
        return 2 * 1024 * 1024
    return 4 * 1024 * 1024


def _scale_kernel(scale_ref, x_ref, o_ref):
    # scale_ref: (1,) f32 in SMEM; x_ref / o_ref: (tm, 128) tiles in VMEM.
    # Multiply in f32 (promotes low-precision inputs) and cast back explicitly;
    # the cast rides the VPU slot, which has huge slack in this mem-bound loop.
    o_ref[...] = (x_ref[...] * scale_ref[0]).astype(o_ref.dtype)


def _scale_2d(x2: jax.Array, scale_f32: jax.Array, block_bytes: int,
              donate_input: bool) -> jax.Array:
    """Run the elementwise scalar multiply on a lane-dense (M, 128) slab."""
    M, N = x2.shape
    itemsize = jnp.dtype(x2.dtype).itemsize
    slab_bytes = M * N * itemsize

    # Biggest row tile that keeps one block within `block_bytes`, rounded to a
    # multiple of 32 sublanes.
    rows_per_block = max(_SUBLANES,
                         (block_bytes // (N * itemsize)) // _SUBLANES * _SUBLANES)

    if rows_per_block >= M:
        if slab_bytes > _TWO_CORE_MIN_BYTES and M > _SUBLANES:
            # Force >= 2 grid steps so v7x's two TensorCores both stream and
            # the in-DMA / out-DMA of a single block don't serialize.
            tm = min(M, _round_up(pl.cdiv(M, 2), _SUBLANES))
        else:
            # Whole slab as one full-extent block (legal regardless of 8/128
            # divisibility).
            tm = M
    else:
        tm = rows_per_block
    grid = (pl.cdiv(M, tm),)

    # 2 double-buffered buffers x (in + out) x tile + slack for scale/sems.
    tile_bytes = tm * N * itemsize
    vmem_limit = 4 * tile_bytes + _VMEM_SLACK_BYTES

    extra_kwargs = {}
    if donate_input:
        # x2 (input index 1) aliases the output buffer: no second full-size
        # HBM allocation.  Only effective if the caller donates x upstream.
        extra_kwargs["input_output_aliases"] = {1: 0}

    return pl.pallas_call(
        _scale_kernel,
        out_shape=jax.ShapeDtypeStruct((M, N), x2.dtype),
        grid=grid,
        in_specs=[
            # Scalar parameter lives in SMEM; whole (1,) array every iteration.
            pl.BlockSpec(memory_space=pltpu.MemorySpace.SMEM),
            pl.BlockSpec((tm, N), lambda i: (i, 0)),
        ],
        out_specs=pl.BlockSpec((tm, N), lambda i: (i, 0)),
        compiler_params=pltpu.CompilerParams(
            dimension_semantics=("parallel",),
            vmem_limit_bytes=vmem_limit,
        ),
        **extra_kwargs,
    )(scale_f32, x2)


def scale_forward(x: jax.Array, scale: jax.Array, *,
                  block_bytes: int | None = None,
                  donate_input: bool = False,
                  min_pallas_bytes: int = 0) -> jax.Array:
    """Equivalent of Scale.forward: x * scale (scale has shape (1,)).

    `min_pallas_bytes`: tensors smaller than this are handled by a plain XLA
    multiply (recommended ~256 KiB in production so XLA can fuse it); default 0
    so the Pallas path is always exercised here.
    """
    orig_shape = x.shape
    total = x.size
    itemsize = jnp.dtype(x.dtype).itemsize
    scale_f32 = jnp.asarray(scale, dtype=jnp.float32).reshape((1,))

    if total == 0 or total * itemsize < min_pallas_bytes:
        return (x.astype(jnp.float32) * scale_f32[0]).astype(x.dtype)

    if block_bytes is None:
        block_bytes = _default_block_bytes()

    if total % _LANES == 0:
        # Lane-dense 2D slab: last dim = 128 -> unmasked vector stores.
        x2 = x.reshape(total // _LANES, _LANES)
        out2 = _scale_2d(x2, scale_f32, block_bytes, donate_input)
        return out2.reshape(orig_shape)

    # Ragged total: run the kernel on the 128-aligned prefix and handle the
    # (<128-element) tail with a tiny XLA multiply.  No full-array pad/slice
    # round trip.
    x_flat = x.reshape(-1)
    aligned = (total // _LANES) * _LANES
    tail = (x_flat[aligned:].astype(jnp.float32) * scale_f32[0]).astype(x.dtype)
    if aligned == 0:
        return tail.reshape(orig_shape)
    head2 = _scale_2d(x_flat[:aligned].reshape(aligned // _LANES, _LANES),
                      scale_f32, block_bytes, donate_input=False)
    return jnp.concatenate([head2.reshape(-1), tail]).reshape(orig_shape)


if __name__ == "__main__":
    key = jax.random.PRNGKey(0)
    k1, k2, k3 = jax.random.split(key, 3)

    # Parameter init, matching nn.Parameter(torch.FloatTensor([init_value])).
    init_value = 1.0
    scale = jnp.array([init_value], dtype=jnp.float32)
    scale2 = jnp.array([0.75], dtype=jnp.float32)

    # 1) Primary: NCHW f32, small (batch=2, channels=4, spatial=16x16).
    x = jax.random.normal(key, (2, 4, 16, 16), dtype=jnp.float32)
    y = jax.block_until_ready(scale_forward(x, scale))
    assert y.shape == x.shape and y.dtype == x.dtype
    assert jnp.allclose(y, x * scale, atol=0.0, rtol=0.0)

    # 2) bf16 activations: multiply in f32, explicit cast back to bf16.
    xb = jax.random.normal(k1, (2, 4, 16, 16), dtype=jnp.float32).astype(jnp.bfloat16)
    yb = jax.block_until_ready(scale_forward(xb, scale2))
    refb = (xb.astype(jnp.float32) * scale2[0]).astype(jnp.bfloat16)
    assert yb.dtype == jnp.bfloat16
    assert jnp.allclose(yb.astype(jnp.float32), refb.astype(jnp.float32),
                        rtol=1e-2, atol=1e-2)

    # 3) Ragged total (1155 elements, not a multiple of 128): prefix + tail path.
    xr = jax.random.normal(k2, (3, 5, 7, 11), dtype=jnp.float32)
    yr = jax.block_until_ready(scale_forward(xr, scale2))
    assert yr.shape == xr.shape
    assert jnp.allclose(yr, xr * scale2)

    # 4) Multi-block grid path (small block budget forces grid > 1).
    xm = jax.random.normal(key, (8, 16, 32, 32), dtype=jnp.float32)
    ym = jax.block_until_ready(scale_forward(xm, scale2, block_bytes=64 * 1024))
    assert jnp.allclose(ym, xm * scale2)

    # 5) Mid-size slab (> 1 MiB): exercises the >=2-grid-step split so both
    #    v7x TensorCores stream (still correct with a partial last block).
    xl = jax.random.normal(k3, (2, 64, 64, 64), dtype=jnp.float32)   # 2 MiB
    yl = jax.block_until_ready(scale_forward(xl, scale2))
    assert jnp.allclose(yl, xl * scale2)

    print("KERNEL_OK")
</pallas_src>

<mosaic_0001>
module attributes {stable_mosaic.version = 11 : i64} {
  func.func @_scale_kernel(%arg0: i32, %arg1: memref<1xf32, #tpu.memory_space<smem>>, %arg2: memref<16x128xf32, #tpu.memory_space<vmem>>, %arg3: memref<16x128xf32, #tpu.memory_space<vmem>>) attributes {dimension_semantics = [#tpu.dimension_semantics<parallel>], iteration_bounds = array<i64: 1>, scalar_prefetch = 0 : i64, scratch_operands = 0 : i64, tpu.core_type = #tpu.core_type<tc>, window_params = [{transform_indices = @transform_0, window_bounds = array<i64: 1>}, {transform_indices = @transform_1, window_bounds = array<i64: 16, 128>}, {transform_indices = @transform_2, window_bounds = array<i64: 16, 128>}]} {
    %c0 = arith.constant 0 : index
    %c0_0 = arith.constant 0 : index
    %0 = vector.load %arg2[%c0, %c0_0] : memref<16x128xf32, #tpu.memory_space<vmem>>, vector<16x128xf32>
    %c0_1 = arith.constant 0 : index
    %1 = memref.load %arg1[%c0_1] : memref<1xf32, #tpu.memory_space<smem>>
    %2 = vector.broadcast %1 : f32 to vector<16x128xf32>
    %3 = arith.mulf %0, %2 : vector<16x128xf32>
    %c0_2 = arith.constant 0 : index
    %c0_3 = arith.constant 0 : index
    %4 = vector.load %arg3[%c0_2, %c0_3] : memref<16x128xf32, #tpu.memory_space<vmem>>, vector<16x128xf32>
    tpu.vector_store %arg3[%c0_2, %c0_3], %3 {strides = array<i32>} : memref<16x128xf32, #tpu.memory_space<vmem>>, vector<16x128xf32>,
    return
  }
  func.func @transform_0(%arg0: i32) -> i32 {
    %c0_i32 = arith.constant 0 : i32
    %c0_i32_0 = arith.constant 0 : i32
    return %c0_i32 : i32
  }
  func.func @transform_1(%arg0: i32) -> (i32, i32) {
    %c0_i32 = arith.constant 0 : i32
    %c0_i32_0 = arith.constant 0 : i32
    return %arg0, %c0_i32 : i32, i32
  }
  func.func @transform_2(%arg0: i32) -> (i32, i32) {
    %c0_i32 = arith.constant 0 : i32
    %c0_i32_0 = arith.constant 0 : i32
    return %arg0, %c0_i32 : i32, i32
  }
}

</mosaic_0001>

<llo_original>
// kernel: tpu_custom_call.1
$region0: #{tpu_custom_call.1}
  #allocation0 [shape = 'u32[]', space=smem, size = 0x4, offset = 0x4, fixed_abs, tag = 'smem constant byte address 0x4 - core index']
  #allocation1 [shape = 'u32[144,128]{1,0:T(1,128)}', space=vmem, size = 0x12000, scoped, tag = 'internal scratch']
  #allocation2 [shape = 'f32[1]{0:T(128)S(6)}', space=smem, size = 0x200, scoped, tag = 'scoped memory for tpu_custom_call.1']
  %s0 = inlined_call_operand.<no memory space> [shape: f32[1], index: 0, kind: input, shape index: {}]
  %s1 = inlined_call_operand.hbm [shape: f32[16,128], index: 1, kind: input, shape index: {}]
  %s2 = inlined_call_operand.hbm [shape: f32[16,128], index: 2, kind: output, shape index: {}]
  %s3 = sld [smem:[#allocation0]]
  $region22: #{tpu_custom_call.1} parent=0
    _
  %s5 = ssub.s32 1, %s3
  %s6 = scalar_select 0, %s5, %s3
  %7 = sst [smem:[#allocation2]] %s0
  $region1: #{tpu_custom_call.1} parent=0
    #allocation3 [shape = 'u8[8192]{0}', space=vmem, size = 0x2000, scoped, tag = 'input window, operand 1, single buffered']
    #allocation4 [shape = 's32[1]{0}', space=sflag, size = 0x4, scoped, tag = 'scoped memory for tpu_custom_call.1']
    #allocation5 [shape = 's32[1]{0}', space=sflag, size = 0x4, scoped, tag = 'scoped memory for tpu_custom_call.1']
    #allocation6 [shape = 'u8[8192]{0}', space=vmem, size = 0x2000, scoped, tag = 'output window, operand 0, single buffered']
    %8 = vsyncpa [#allocation4], 0
    %9 = vsyncpa [#allocation5], 0
    // Predicated region
    $region2: #{tpu_custom_call.1} parent=1 // pred_check
      _
    $region3: #{tpu_custom_call.1} parent=1 // pred_check_branch
      %11 = sbr.rel (0) target = $region5
    $region4: #{tpu_custom_call.1} parent=1 // pred_region
      _
    $region5: #{tpu_custom_call.1} parent=1 // pred_fallthru
      _
    // Predicated region
    $region6: #{tpu_custom_call.1} parent=1 // pred_check
      _
    $region7: #{tpu_custom_call.1} parent=1 // pred_check_branch
      %13 = sbr.rel (0) target = $region9
    $region8: #{tpu_custom_call.1} parent=1 // pred_region
      %s15 = ssub.s32 256, 256
      %16 = vsyncadd [#allocation4], %s15
      %s17 = sshll.u32 [#allocation3], 4
      %s18 = int_to_ptr.vmem [resolvable:$true] %s17
      %23 = dma.hbm_to_vmem [thread:$0]  %s1, 256, %s18, [#allocation4], 128, 128, 8
    $region9: #{tpu_custom_call.1} parent=1 // pred_fallthru
      _
    // Predicated region
    $region10: #{tpu_custom_call.1} parent=1 // pred_check
      _
    $region11: #{tpu_custom_call.1} parent=1 // pred_check_branch
      %25 = sbr.rel (0) target = $region13
    $region12: #{tpu_custom_call.1} parent=1 // pred_region
      %26 = dma.done [#allocation4], 256
    $region13: #{tpu_custom_call.1} parent=1 // pred_fallthru
      _
    %v27 = vld [vmem:[#allocation3] sm:$0xff]
    %v28 = vld [vmem:[#allocation3 + $0x8] sm:$0xff]
    %s29 = sld [smem:[#allocation2]]
    %v30 = vstv %s29
    %v31 = vmul.f32 %v27, %v30
    %v32 = vmul.f32 %v28, %v30
    %33 = vst [vmem:[#allocation6] sm:$0xff] %v31
    %34 = vst [vmem:[#allocation6 + $0x8] sm:$0xff] %v32
    // Predicated region
    $region14: #{tpu_custom_call.1} parent=1 // pred_check
      _
    $region15: #{tpu_custom_call.1} parent=1 // pred_check_branch
      %36 = sbr.rel (0) target = $region17
    $region16: #{tpu_custom_call.1} parent=1 // pred_region
      %s38 = ssub.s32 256, 256
      %39 = vsyncadd [#allocation5], %s38
      %s40 = sshll.u32 [#allocation6], 4
      %s41 = int_to_ptr.vmem [resolvable:$true] %s40
      %46 = dma.vmem_to_hbm [thread:$0]  %s41, 256, %s2, [#allocation5], 128, 128, 8
    $region17: #{tpu_custom_call.1} parent=1 // pred_fallthru
      _
    // Predicated region
    $region18: #{tpu_custom_call.1} parent=1 // pred_check
      _
    $region19: #{tpu_custom_call.1} parent=1 // pred_check_branch
      %48 = sbr.rel (0) target = $region21
    $region20: #{tpu_custom_call.1} parent=1 // pred_region
      %49 = dma.done [#allocation5], 256
    $region21: #{tpu_custom_call.1} parent=1 // pred_fallthru
      _
    %50 = vsyncpa [#allocation4], 1
    %51 = vsyncpa [#allocation5], 1

</llo_original>
